<compile_context>
chip_gen: v7x
topology: tpu7x:2x2x1
jax: 0.10.0
libtpu: 0.0.40
codegen_flags: <defaults>
</compile_context>

<pallas_src>
import functools
import math

import jax
import jax.numpy as jnp
from jax.experimental import pallas as pl
from jax.experimental.pallas import tpu as pltpu

NEG_INF = -1e9
LN_EPS = 1e-5
_KV_PAD = 128                       # pad context/key length to a multiple of this
_VMEM_LIMIT = 64 * 1024 * 1024      # explicit scoped-VMEM ceiling (fits all gens)


# ------------------------------ small helpers ------------------------------

def _round_up(v, mult):
    return ((v + mult - 1) // mult) * mult


def _row_tiling(r, max_tile=512):
    """cdiv-style row tiling: (tile, padded_rows, n_blocks); tile % 8 == 0."""
    nb = -(-r // max_tile)
    tr = _round_up(-(-r // nb), 8)
    return tr, tr * nb, nb


def _pick_bm(m, row_sizes, max_rows=512, max_bm=8):
    """Batch-block size: largest divisor of m keeping bm*rows <= max_rows and
    8-aligned sublane blocks (or block == full array)."""
    biggest = max(row_sizes)
    for bm in range(min(m, max_bm), 0, -1):
        if m % bm:
            continue
        if bm * biggest > max_rows:
            continue
        if all((bm * r) % 8 == 0 for r in row_sizes) or bm == m:
            return bm
    if all(r % 8 == 0 for r in row_sizes):
        return 1
    return m                         # single block over the whole batch


def _layernorm(x, g, b):
    mu = jnp.mean(x, axis=-1, keepdims=True)
    var = jnp.mean((x - mu) ** 2, axis=-1, keepdims=True)
    return (x - mu) * jax.lax.rsqrt(var + LN_EPS) * g + b


def _mha(q, k, v, allow, n_heads):
    """Per-example multi-head attention. q:[nq,dz], k/v:[nk,dz] (bf16).
    Returns concatenated head outputs [nq, dz] (f32), heads lane-contiguous."""
    dz = q.shape[-1]
    dh = dz // n_heads
    outs = []
    for h in range(n_heads):                          # static, small unroll
        qh = q[:, h * dh:(h + 1) * dh]
        kh = k[:, h * dh:(h + 1) * dh]
        vh = v[:, h * dh:(h + 1) * dh]
        # scores: contract last dims -> no K transpose through the XLU
        s = jax.lax.dot_general(qh, kh, (((1,), (1,)), ((), ())),
                                preferred_element_type=jnp.float32)
        if allow is not None:
            s = jnp.where(allow, s, NEG_INF)
        s = s - jnp.max(s, axis=-1, keepdims=True)
        p = jnp.exp(s)
        p = p * pl.reciprocal(jnp.sum(p, axis=-1, keepdims=True), approx=True)
        outs.append(jnp.dot(p.astype(jnp.bfloat16), vh,
                            preferred_element_type=jnp.float32))
    return jnp.concatenate(outs, axis=-1)


def _ffn_tail(x, lng, lnb, w1, b1, w2, b2):
    """LN + W1 + ReLU + W2 + residual on an f32 [rows, dz] stream."""
    h = _layernorm(x, lng, lnb).astype(jnp.bfloat16)
    h = jnp.maximum(jnp.dot(h, w1, preferred_element_type=jnp.float32) + b1,
                    0.0).astype(jnp.bfloat16)
    return x + jnp.dot(h, w2, preferred_element_type=jnp.float32) + b2


# ----------------------- fused SA + FFN (context stream) --------------------

def _sa_ffn_kernel(x_ref, ln1g, ln1b, wq, bq, wkv, bkv, wo, bo,
                   ln2g, ln2b, w1, b1, w2, b2, o_ref, *, bm, seq, n_heads):
    dz = x_ref.shape[-1]
    x = x_ref[...].astype(jnp.float32)                          # [bm*seq, dz]

    h = _layernorm(x, ln1g[...], ln1b[...]).astype(jnp.bfloat16)
    q = (jnp.dot(h, wq[...], preferred_element_type=jnp.float32)
         + bq[...]).astype(jnp.bfloat16)                        # scale pre-folded
    kvp = jnp.dot(h, wkv[...], preferred_element_type=jnp.float32) + bkv[...]
    k = kvp[:, :dz].astype(jnp.bfloat16)
    v = kvp[:, dz:].astype(jnp.bfloat16)

    # causal mask built once from iota (hoisted out of the batch/head loops)
    row = jax.lax.broadcasted_iota(jnp.int32, (seq, seq), 0)
    col = jax.lax.broadcasted_iota(jnp.int32, (seq, seq), 1)
    allow = col <= row

    outs = []
    for b in range(bm):                                         # static batch block
        sl = slice(b * seq, (b + 1) * seq)
        outs.append(_mha(q[sl], k[sl], v[sl], allow, n_heads))
    attn = jnp.concatenate(outs, axis=0).astype(jnp.bfloat16)   # [bm*seq, dz]
    # single K=dz output projection
    x = x + jnp.dot(attn, wo[...], preferred_element_type=jnp.float32) + bo[...]

    x = _ffn_tail(x, ln2g[...], ln2b[...], w1[...], b1[...], w2[...], b2[...])
    o_ref[...] = x.astype(o_ref.dtype)


def sa_ffn_block(x, lp, n_heads):
    """Fused [LN1 + causal SA + residual] + [LN2 + FFN + residual].  x:[m,seq,dz] bf16."""
    m, seq, dz = x.shape
    sa = lp["sa"]
    dff = lp["ffc_w1"].shape[1]
    bm = _pick_bm(m, (seq,))
    kern = functools.partial(_sa_ffn_kernel, bm=bm, seq=seq, n_heads=n_heads)
    w = lambda shape: pl.BlockSpec(shape, lambda i: (0, 0))
    out = pl.pallas_call(
        kern,
        out_shape=jax.ShapeDtypeStruct((m * seq, dz), jnp.bfloat16),
        grid=(m // bm,),
        in_specs=[pl.BlockSpec((bm * seq, dz), lambda i: (i, 0)),
                  w((1, dz)), w((1, dz)),
                  w((dz, dz)), w((1, dz)),
                  w((dz, 2 * dz)), w((1, 2 * dz)),
                  w((dz, dz)), w((1, dz)),
                  w((1, dz)), w((1, dz)),
                  w((dz, dff)), w((1, dff)),
                  w((dff, dz)), w((1, dz))],
        out_specs=pl.BlockSpec((bm * seq, dz), lambda i: (i, 0)),
        compiler_params=pltpu.CompilerParams(
            dimension_semantics=("parallel",),
            vmem_limit_bytes=_VMEM_LIMIT),
    )(x.reshape(m * seq, dz), lp["ln1_g"], lp["ln1_b"],
      sa["wq"], sa["bq"], sa["wkv"], sa["bkv"], sa["wo"], sa["bo"],
      lp["ln2_g"], lp["ln2_b"],
      lp["ffc_w1"], lp["ffc_b1"], lp["ffc_w2"], lp["ffc_b2"])
    return out.reshape(m, seq, dz)


# ----------------------- fused CA + FFN (target stream) ---------------------

def _ca_ffn_kernel(x_ref, kv_ref, ln3g, ln3b, wq, bq, wkv, bkv, wo, bo,
                   ln4g, ln4b, w1, b1, w2, b2, o_ref,
                   *, bm, nq, nk, nk_real, n_heads, causal):
    dz = x_ref.shape[-1]
    x = x_ref[...].astype(jnp.float32)                          # [bm*nq, dz]

    hq = _layernorm(x, ln3g[...], ln3b[...]).astype(jnp.bfloat16)
    # TODO(synk): K/V stream used un-normalized (matches previous revision).
    hkv = kv_ref[...].astype(jnp.bfloat16)                      # [bm*nk, dz]
    q = (jnp.dot(hq, wq[...], preferred_element_type=jnp.float32)
         + bq[...]).astype(jnp.bfloat16)
    kvp = jnp.dot(hkv, wkv[...], preferred_element_type=jnp.float32) + bkv[...]
    k = kvp[:, :dz].astype(jnp.bfloat16)
    v = kvp[:, dz:].astype(jnp.bfloat16)

    allow = None
    if causal:
        # mask_ca = tril(ones(nq, nk_real), diag=0); padded keys (col >= nk_real
        # > row) are excluded automatically by col <= row.
        row = jax.lax.broadcasted_iota(jnp.int32, (nq, nk), 0)
        col = jax.lax.broadcasted_iota(jnp.int32, (nq, nk), 1)
        allow = col <= row
    elif nk != nk_real:
        # full cross attention; only exclude the zero-padded keys.
        col = jax.lax.broadcasted_iota(jnp.int32, (nq, nk), 1)
        allow = col < nk_real

    outs = []
    for b in range(bm):
        qb = q[b * nq:(b + 1) * nq]
        kb = k[b * nk:(b + 1) * nk]
        vb = v[b * nk:(b + 1) * nk]
        outs.append(_mha(qb, kb, vb, allow, n_heads))
    attn = jnp.concatenate(outs, axis=0).astype(jnp.bfloat16)
    x = x + jnp.dot(attn, wo[...], preferred_element_type=jnp.float32) + bo[...]

    x = _ffn_tail(x, ln4g[...], ln4b[...], w1[...], b1[...], w2[...], b2[...])
    o_ref[...] = x.astype(o_ref.dtype)


def ca_ffn_block(zt, zc, lp, n_heads, causal, nk_real):
    """Fused [LN3 + cross-attn(zt->zc) + residual] + [LN4 + FFN + residual]."""
    m, nq, dz = zt.shape
    nk = zc.shape[1]
    ca = lp["ca"]
    dff = lp["fft_w1"].shape[1]
    bm = _pick_bm(m, (nq, nk))
    kern = functools.partial(_ca_ffn_kernel, bm=bm, nq=nq, nk=nk,
                             nk_real=nk_real, n_heads=n_heads, causal=causal)
    w = lambda shape: pl.BlockSpec(shape, lambda i: (0, 0))
    out = pl.pallas_call(
        kern,
        out_shape=jax.ShapeDtypeStruct((m * nq, dz), jnp.bfloat16),
        grid=(m // bm,),
        in_specs=[pl.BlockSpec((bm * nq, dz), lambda i: (i, 0)),
                  pl.BlockSpec((bm * nk, dz), lambda i: (i, 0)),
                  w((1, dz)), w((1, dz)),
                  w((dz, dz)), w((1, dz)),
                  w((dz, 2 * dz)), w((1, 2 * dz)),
                  w((dz, dz)), w((1, dz)),
                  w((1, dz)), w((1, dz)),
                  w((dz, dff)), w((1, dff)),
                  w((dff, dz)), w((1, dz))],
        out_specs=pl.BlockSpec((bm * nq, dz), lambda i: (i, 0)),
        compiler_params=pltpu.CompilerParams(
            dimension_semantics=("parallel",),
            vmem_limit_bytes=_VMEM_LIMIT),
    )(zt.reshape(m * nq, dz), zc.reshape(m * nk, dz),
      lp["ln3_g"], lp["ln3_b"],
      ca["wq"], ca["bq"], ca["wkv"], ca["bkv"], ca["wo"], ca["bo"],
      lp["ln4_g"], lp["ln4_b"],
      lp["fft_w1"], lp["fft_b1"], lp["fft_w2"], lp["fft_b2"])
    return out.reshape(m, nq, dz)


# ------------------------------- xy encoder MLP ------------------------------

def _mlp_kernel(x_ref, w1, b1, w2, b2, o_ref):
    h = jnp.maximum(jnp.dot(x_ref[...], w1[...],
                            preferred_element_type=jnp.float32) + b1[...],
                    0.0).astype(jnp.bfloat16)
    o_ref[...] = (jnp.dot(h, w2[...], preferred_element_type=jnp.float32)
                  + b2[...]).astype(o_ref.dtype)


def xy_encode(params, z3):
    m, n, din = z3.shape
    dzh = params["xy_w1"].shape[1]
    dz = params["xy_w2"].shape[1]
    r = m * n
    tr, r_pad, nb = _row_tiling(r)
    z2 = z3.reshape(r, din).astype(jnp.bfloat16)
    if r_pad != r:
        z2 = jnp.pad(z2, ((0, r_pad - r), (0, 0)))
    w = lambda shape: pl.BlockSpec(shape, lambda i: (0, 0))
    out = pl.pallas_call(
        _mlp_kernel,
        out_shape=jax.ShapeDtypeStruct((r_pad, dz), jnp.bfloat16),
        grid=(nb,),
        in_specs=[pl.BlockSpec((tr, din), lambda i: (i, 0)),
                  w((din, dzh)), w((1, dzh)),
                  w((dzh, dz)), w((1, dz))],
        out_specs=pl.BlockSpec((tr, dz), lambda i: (i, 0)),
        compiler_params=pltpu.CompilerParams(
            dimension_semantics=("parallel",),
            vmem_limit_bytes=_VMEM_LIMIT),
    )(z2, params["xy_w1"], params["xy_b1"], params["xy_w2"], params["xy_b2"])
    return out[:r].reshape(m, n, dz)


# ----------------------------- transformer stack -----------------------------

def transformer_encoder(layers, zc, zt, n_heads, ca_causal, nk_real):
    for lp in layers:
        zc = sa_ffn_block(zc, lp, n_heads)                       # context SA+FFN
        zt = ca_ffn_block(zt, zc, lp, n_heads, ca_causal, nk_real)  # target CA+FFN
    return zt


# --------------------------- IncTNPBatchedEncoderPrior -----------------------

def _pad_context(zc, nk_real):
    nk_pad = _round_up(nk_real, _KV_PAD)
    if nk_pad != nk_real:
        zc = jnp.pad(zc, ((0, 0), (0, nk_pad - nk_real), (0, 0)))
    return zc


def train_encoder(params, x, y, *, n_heads):
    m, n, dy = y.shape
    dz = params["empty_token"].shape[-1]
    y_tgt = jnp.concatenate(
        [jnp.zeros((m, n, dy), y.dtype), jnp.ones((m, n, 1), y.dtype)], -1)
    y_ctx = jnp.concatenate([y, jnp.zeros((m, n, 1), y.dtype)], -1)
    zc = xy_encode(params, jnp.concatenate([x, y_ctx], -1))
    zt = xy_encode(params, jnp.concatenate([x, y_tgt], -1))
    start = jnp.broadcast_to(params["empty_token"], (m, 1, dz)).astype(zc.dtype)
    zc = jnp.concatenate([start, zc], axis=1)                    # [m, n+1, dz]
    nk_real = n + 1
    zc = _pad_context(zc, nk_real)
    zt = transformer_encoder(params["layers"], zc, zt, n_heads,
                             ca_causal=True, nk_real=nk_real)
    assert zt.ndim == 3 and zt.shape[0] == m and zt.shape[1] == n
    return zt.astype(jnp.float32)


def predict_encoder(params, xc, yc, xt, *, n_heads):
    m, nc, _ = xc.shape
    nt = xt.shape[1]
    dy = yc.shape[2]
    dz = params["empty_token"].shape[-1]
    yc_pad = jnp.concatenate([yc, jnp.zeros((m, nc, 1), yc.dtype)], -1)
    zc = xy_encode(params, jnp.concatenate([xc, yc_pad], -1))
    yt = jnp.concatenate(
        [jnp.zeros((m, nt, dy), xt.dtype), jnp.ones((m, nt, 1), xt.dtype)], -1)
    zt = xy_encode(params, jnp.concatenate([xt, yt], -1))
    start = jnp.broadcast_to(params["empty_token"], (m, 1, dz)).astype(zc.dtype)
    zc = jnp.concatenate([start, zc], axis=1)                    # [m, nc+1, dz]
    nk_real = nc + 1
    zc = _pad_context(zc, nk_real)
    zt = transformer_encoder(params["layers"], zc, zt, n_heads,
                             ca_causal=False, nk_real=nk_real)
    return zt.astype(jnp.float32)


def forward(params, x=None, y=None, xc=None, yc=None, xt=None, *, n_heads=4):
    train_call = (x is not None and y is not None and
                  xc is None and yc is None and xt is None)
    predict_call = (xc is not None and yc is not None and xt is not None and
                    x is None and y is None)
    assert train_call or predict_call, (
        "Invalid encoder call. Can't differentiate between prediction or "
        "training call")
    if train_call:
        return train_encoder(params, x, y, n_heads=n_heads)
    return predict_encoder(params, xc, yc, xt, n_heads=n_heads)


# ------------------------------ Parameter init ------------------------------

def _dense(key, din, dout):
    w = 0.02 * jax.random.normal(key, (din, dout), jnp.float32)
    b = jnp.zeros((1, dout), jnp.float32)                # 2-D biases for Pallas
    return w, b


def _attn_params(key, dz):
    ks = jax.random.split(key, 4)
    wq, bq = _dense(ks[0], dz, dz)
    wk, bk = _dense(ks[1], dz, dz)
    wv, bv = _dense(ks[2], dz, dz)
    wo, bo = _dense(ks[3], dz, dz)
    return dict(wq=wq, bq=bq, wk=wk, bk=bk, wv=wv, bv=bv, wo=wo, bo=bo)


def init_params(key, dx, dy, dz, n_layers, dff):
    """Raw f32 parameters (mirrors the PyTorch module's parameterization)."""
    din = dx + dy + 1
    keys = jax.random.split(key, 3 + n_layers)
    xy_w1, xy_b1 = _dense(keys[0], din, dz)
    xy_w2, xy_b2 = _dense(keys[1], dz, dz)
    empty_token = 0.02 * jax.random.normal(keys[2], (1, 1, dz), jnp.float32)
    ones = jnp.ones((1, dz), jnp.float32)
    zeros = jnp.zeros((1, dz), jnp.float32)
    layers = []
    for li in range(n_layers):
        lk = jax.random.split(keys[3 + li], 6)
        ffc_w1, ffc_b1 = _dense(lk[2], dz, dff)
        ffc_w2, ffc_b2 = _dense(lk[3], dff, dz)
        fft_w1, fft_b1 = _dense(lk[4], dz, dff)
        fft_w2, fft_b2 = _dense(lk[5], dff, dz)
        layers.append(dict(
            sa=_attn_params(lk[0], dz), ca=_attn_params(lk[1], dz),
            ffc_w1=ffc_w1, ffc_b1=ffc_b1, ffc_w2=ffc_w2, ffc_b2=ffc_b2,
            fft_w1=fft_w1, fft_b1=fft_b1, fft_w2=fft_w2, fft_b2=fft_b2,
            ln1_g=ones, ln1_b=zeros, ln2_g=ones, ln2_b=zeros,
            ln3_g=ones, ln3_b=zeros, ln4_g=ones, ln4_b=zeros,
        ))
    return dict(xy_w1=xy_w1, xy_b1=xy_b1, xy_w2=xy_w2, xy_b2=xy_b2,
                empty_token=empty_token, layers=layers)


def _prep_attn(a, dz, n_heads):
    scale = 1.0 / math.sqrt(dz // n_heads)
    return dict(
        wq=(a["wq"] * scale).astype(jnp.bfloat16),       # fold 1/sqrt(dh) at prep
        bq=a["bq"] * scale,
        wkv=jnp.concatenate([a["wk"], a["wv"]], axis=1).astype(jnp.bfloat16),
        bkv=jnp.concatenate([a["bk"], a["bv"]], axis=1),
        wo=a["wo"].astype(jnp.bfloat16),
        bo=a["bo"])


def prepare_params(raw, n_heads):
    """Prep-time transforms: bf16 MXU weights, fused KV projection, folded
    attention scale; biases and LayerNorm params stay f32."""
    dz = raw["empty_token"].shape[-1]
    assert dz % n_heads == 0
    layers = []
    for lp in raw["layers"]:
        layers.append(dict(
            sa=_prep_attn(lp["sa"], dz, n_heads),
            ca=_prep_attn(lp["ca"], dz, n_heads),
            ffc_w1=lp["ffc_w1"].astype(jnp.bfloat16), ffc_b1=lp["ffc_b1"],
            ffc_w2=lp["ffc_w2"].astype(jnp.bfloat16), ffc_b2=lp["ffc_b2"],
            fft_w1=lp["fft_w1"].astype(jnp.bfloat16), fft_b1=lp["fft_b1"],
            fft_w2=lp["fft_w2"].astype(jnp.bfloat16), fft_b2=lp["fft_b2"],
            ln1_g=lp["ln1_g"], ln1_b=lp["ln1_b"],
            ln2_g=lp["ln2_g"], ln2_b=lp["ln2_b"],
            ln3_g=lp["ln3_g"], ln3_b=lp["ln3_b"],
            ln4_g=lp["ln4_g"], ln4_b=lp["ln4_b"]))
    return dict(
        xy_w1=raw["xy_w1"].astype(jnp.bfloat16), xy_b1=raw["xy_b1"],
        xy_w2=raw["xy_w2"].astype(jnp.bfloat16), xy_b2=raw["xy_b2"],
        empty_token=raw["empty_token"].astype(jnp.bfloat16),
        layers=layers)


# ------------------------------------ main ----------------------------------

if __name__ == "__main__":
    m, n, dx, dy = 2, 8, 2, 1
    dz, n_heads, n_layers, dff = 32, 4, 2, 64

    key = jax.random.PRNGKey(0)
    kx, ky, kp = jax.random.split(key, 3)
    x = jax.random.normal(kx, (m, n, dx), jnp.float32)
    y = jax.random.normal(ky, (m, n, dy), jnp.float32)
    params = prepare_params(init_params(kp, dx, dy, dz, n_layers, dff), n_heads)

    # training-style call: forward(x=x, y=y) -> [m, n, dz]
    zt_train = forward(params, x=x, y=y, n_heads=n_heads)
    zt_train = jax.block_until_ready(zt_train)
    assert zt_train.shape == (m, n, dz)
    assert bool(jnp.all(jnp.isfinite(zt_train)))

    # prediction-style call: forward(xc, yc, xt) -> [m, nt, dz]
    xt = x[:, :4, :]
    zt_pred = forward(params, xc=x, yc=y, xt=xt, n_heads=n_heads)
    zt_pred = jax.block_until_ready(zt_pred)
    assert zt_pred.shape == (m, 4, dz)
    assert bool(jnp.all(jnp.isfinite(zt_pred)))

    print("KERNEL_OK")
</pallas_src>

<mosaic_0001>
module attributes {stable_mosaic.version = 11 : i64} {
  func.func @_mlp_kernel(%arg0: i32, %arg1: memref<16x4xbf16, #tpu.memory_space<vmem>>, %arg2: memref<4x32xbf16, #tpu.memory_space<vmem>>, %arg3: memref<1x32xf32, #tpu.memory_space<vmem>>, %arg4: memref<32x32xbf16, #tpu.memory_space<vmem>>, %arg5: memref<1x32xf32, #tpu.memory_space<vmem>>, %arg6: memref<16x32xbf16, #tpu.memory_space<vmem>>) attributes {dimension_semantics = [#tpu.dimension_semantics<parallel>], iteration_bounds = array<i64: 1>, scalar_prefetch = 0 : i64, scratch_operands = 0 : i64, tpu.core_type = #tpu.core_type<tc>, window_params = [{transform_indices = @transform_0, window_bounds = array<i64: 16, 4>}, {pipeline_mode = #tpu.pipeline_mode<synchronous>, transform_indices = @transform_1, window_bounds = array<i64: 4, 32>}, {pipeline_mode = #tpu.pipeline_mode<synchronous>, transform_indices = @transform_2, window_bounds = array<i64: 1, 32>}, {pipeline_mode = #tpu.pipeline_mode<synchronous>, transform_indices = @transform_3, window_bounds = array<i64: 32, 32>}, {pipeline_mode = #tpu.pipeline_mode<synchronous>, transform_indices = @transform_4, window_bounds = array<i64: 1, 32>}, {transform_indices = @transform_5, window_bounds = array<i64: 16, 32>}]} {
    %c0 = arith.constant 0 : index
    %c0_0 = arith.constant 0 : index
    %0 = vector.load %arg1[%c0, %c0_0] : memref<16x4xbf16, #tpu.memory_space<vmem>>, vector<16x4xbf16>
    %c0_1 = arith.constant 0 : index
    %c0_2 = arith.constant 0 : index
    %1 = vector.load %arg2[%c0_1, %c0_2] : memref<4x32xbf16, #tpu.memory_space<vmem>>, vector<4x32xbf16>
    %cst = arith.constant dense<0.000000e+00> : vector<16x32xf32>
    %2 = tpu.matmul %0, %1, %cst {dimension_numbers = #tpu.dot_dimension_numbers<[1], [0], [0], [1], [0, 0, 1, 1], [], []>} : vector<16x4xbf16>, vector<4x32xbf16>, vector<16x32xf32> -> vector<16x32xf32>
    %c0_3 = arith.constant 0 : index
    %c0_4 = arith.constant 0 : index
    %3 = vector.load %arg3[%c0_3, %c0_4] : memref<1x32xf32, #tpu.memory_space<vmem>>, vector<1x32xf32>
    %4 = vector.broadcast %3 : vector<1x32xf32> to vector<16x32xf32>
    %5 = arith.addf %2, %4 : vector<16x32xf32>
    %cst_5 = arith.constant 0.000000e+00 : f32
    %6 = vector.broadcast %cst_5 : f32 to vector<16x32xf32>
    %7 = arith.maximumf %5, %6 : vector<16x32xf32>
    %8 = arith.truncf %7 : vector<16x32xf32> to vector<16x32xbf16>
    %c0_6 = arith.constant 0 : index
    %c0_7 = arith.constant 0 : index
    %9 = vector.load %arg4[%c0_6, %c0_7] : memref<32x32xbf16, #tpu.memory_space<vmem>>, vector<32x32xbf16>
    %cst_8 = arith.constant dense<0.000000e+00> : vector<16x32xf32>
    %10 = tpu.matmul %8, %9, %cst_8 {dimension_numbers = #tpu.dot_dimension_numbers<[1], [0], [0], [1], [0, 0, 1, 1], [], []>} : vector<16x32xbf16>, vector<32x32xbf16>, vector<16x32xf32> -> vector<16x32xf32>
    %c0_9 = arith.constant 0 : index
    %c0_10 = arith.constant 0 : index
    %11 = vector.load %arg5[%c0_9, %c0_10] : memref<1x32xf32, #tpu.memory_space<vmem>>, vector<1x32xf32>
    %12 = vector.broadcast %11 : vector<1x32xf32> to vector<16x32xf32>
    %13 = arith.addf %10, %12 : vector<16x32xf32>
    %14 = arith.truncf %13 : vector<16x32xf32> to vector<16x32xbf16>
    %c0_11 = arith.constant 0 : index
    %c0_12 = arith.constant 0 : index
    %15 = vector.load %arg6[%c0_11, %c0_12] : memref<16x32xbf16, #tpu.memory_space<vmem>>, vector<16x32xbf16>
    tpu.vector_store %arg6[%c0_11, %c0_12], %14 {strides = array<i32>} : memref<16x32xbf16, #tpu.memory_space<vmem>>, vector<16x32xbf16>,
    return
  }
  func.func @transform_0(%arg0: i32) -> (i32, i32) {
    %c0_i32 = arith.constant 0 : i32
    %c0_i32_0 = arith.constant 0 : i32
    return %arg0, %c0_i32 : i32, i32
  }
  func.func @transform_1(%arg0: i32) -> (i32, i32) {
    %c0_i32 = arith.constant 0 : i32
    %c0_i32_0 = arith.constant 0 : i32
    %c0_i32_1 = arith.constant 0 : i32
    return %c0_i32, %c0_i32_0 : i32, i32
  }
  func.func @transform_2(%arg0: i32) -> (i32, i32) {
    %c0_i32 = arith.constant 0 : i32
    %c0_i32_0 = arith.constant 0 : i32
    %c0_i32_1 = arith.constant 0 : i32
    return %c0_i32, %c0_i32_0 : i32, i32
  }
  func.func @transform_3(%arg0: i32) -> (i32, i32) {
    %c0_i32 = arith.constant 0 : i32
    %c0_i32_0 = arith.constant 0 : i32
    %c0_i32_1 = arith.constant 0 : i32
    return %c0_i32, %c0_i32_0 : i32, i32
  }
  func.func @transform_4(%arg0: i32) -> (i32, i32) {
    %c0_i32 = arith.constant 0 : i32
    %c0_i32_0 = arith.constant 0 : i32
    %c0_i32_1 = arith.constant 0 : i32
    return %c0_i32, %c0_i32_0 : i32, i32
  }
  func.func @transform_5(%arg0: i32) -> (i32, i32) {
    %c0_i32 = arith.constant 0 : i32
    %c0_i32_0 = arith.constant 0 : i32
    return %arg0, %c0_i32 : i32, i32
  }
}

</mosaic_0001>

<llo_original>
// kernel: tpu_custom_call.1
$region0: #{tpu_custom_call.1}
  #allocation0 [shape = 'u32[]', space=smem, size = 0x4, offset = 0x4, fixed_abs, tag = 'smem constant byte address 0x4 - core index']
  #allocation1 [shape = 'u32[144,128]{1,0:T(1,128)}', space=vmem, size = 0x12000, scoped, tag = 'internal scratch']
  %s0 = inlined_call_operand.hbm [shape: bf16[16,4], index: 0, kind: input, shape index: {}]
  %s1 = inlined_call_operand.hbm [shape: bf16[4,32], index: 1, kind: input, shape index: {}]
  %s2 = inlined_call_operand.hbm [shape: f32[1,32], index: 2, kind: input, shape index: {}]
  %s3 = inlined_call_operand.hbm [shape: bf16[32,32], index: 3, kind: input, shape index: {}]
  %s4 = inlined_call_operand.hbm [shape: f32[1,32], index: 4, kind: input, shape index: {}]
  %s5 = inlined_call_operand.hbm [shape: bf16[16,32], index: 5, kind: output, shape index: {}]
  %s6 = sld [smem:[#allocation0]]
  $region50: #{tpu_custom_call.1} parent=0
    _
  %s8 = ssub.s32 1, %s6
  %s9 = scalar_select 0, %s8, %s6
  $region1: #{tpu_custom_call.1} parent=0
    #allocation2 [shape = 'u8[4096]{0}', space=vmem, size = 0x1000, scoped, tag = 'input window, operand 0, single buffered']
    #allocation3 [shape = 's32[1]{0}', space=sflag, size = 0x4, scoped, tag = 'scoped memory for tpu_custom_call.1']
    #allocation4 [shape = 's32[1]{0}', space=sflag, size = 0x4, scoped, tag = 'scoped memory for tpu_custom_call.1']
    #allocation5 [shape = 'u8[1024]{0}', space=vmem, size = 0x400, scoped, tag = 'input window, operand 1, single buffered']
    #allocation6 [shape = 's32[1]{0}', space=sflag, size = 0x4, scoped, tag = 'scoped memory for tpu_custom_call.1']
    #allocation7 [shape = 'u8[512]{0}', space=vmem, size = 0x400, scoped, tag = 'input window, operand 2, single buffered']
    #allocation8 [shape = 'u8[8192]{0}', space=vmem, size = 0x2000, scoped, tag = 'input window, operand 3, single buffered']
    #allocation9 [shape = 's32[1]{0}', space=sflag, size = 0x4, scoped, tag = 'scoped memory for tpu_custom_call.1']
    #allocation10 [shape = 'u8[512]{0}', space=vmem, size = 0x400, scoped, tag = 'input window, operand 4, single buffered']
    #allocation11 [shape = 'u8[4096]{0}', space=vmem, size = 0x1000, scoped, tag = 'output window, operand 0, single buffered']
    %10 = vsyncpa [#allocation3], 0
    %11 = vsyncpa [#allocation6], 0
    %12 = vsyncpa [#allocation9], 0
    %13 = vsyncpa [#allocation4], 0
    // Predicated region
    $region2: #{tpu_custom_call.1} parent=1 // pred_check
      _
    $region3: #{tpu_custom_call.1} parent=1 // pred_check_branch
      %15 = sbr.rel (0) target = $region5
    $region4: #{tpu_custom_call.1} parent=1 // pred_region
      %s17 = ssub.s32 128, 128
      %18 = vsyncadd [#allocation3], %s17
      %s19 = sshll.u32 [#allocation2], 4
      %s20 = int_to_ptr.vmem [resolvable:$true] %s19
      %25 = dma.hbm_to_vmem [thread:$0]  %s0, 128, %s20, [#allocation3], 64, 64, 4
    $region5: #{tpu_custom_call.1} parent=1 // pred_fallthru
      _
    // Predicated region
    $region6: #{tpu_custom_call.1} parent=1 // pred_check
      _
    $region7: #{tpu_custom_call.1} parent=1 // pred_check_branch
      %27 = sbr.rel (0) target = $region9
    $region8: #{tpu_custom_call.1} parent=1 // pred_region
      %s29 = ssub.s32 32, 32
      %30 = vsyncadd [#allocation6], %s29
      %s32 = sshll.u32 [#allocation5], 4
      %s33 = int_to_ptr.vmem [resolvable:$true] %s32
      %35 = dma.hbm_to_vmem [thread:$0]  %s1, 32, %s33, [#allocation6]
    $region9: #{tpu_custom_call.1} parent=1 // pred_fallthru
      _
    // Predicated region
    $region10: #{tpu_custom_call.1} parent=1 // pred_check
      _
    $region11: #{tpu_custom_call.1} parent=1 // pred_check_branch
      %37 = sbr.rel (0) target = $region13
    $region12: #{tpu_custom_call.1} parent=1 // pred_region
      %s39 = ssub.s32 16, 16
      %40 = vsyncadd [#allocation6], %s39
      %s42 = sshll.u32 [#allocation7], 4
      %s43 = int_to_ptr.vmem [resolvable:$true] %s42
      %45 = dma.hbm_to_vmem [thread:$0]  %s2, 16, %s43, [#allocation6]
    $region13: #{tpu_custom_call.1} parent=1 // pred_fallthru
      _
    // Predicated region
    $region14: #{tpu_custom_call.1} parent=1 // pred_check
      _
    $region15: #{tpu_custom_call.1} parent=1 // pred_check_branch
      %47 = sbr.rel (0) target = $region17
    $region16: #{tpu_custom_call.1} parent=1 // pred_region
      %s49 = ssub.s32 256, 256
      %50 = vsyncadd [#allocation9], %s49
      %s51 = sshll.u32 [#allocation8], 4
      %s52 = int_to_ptr.vmem [resolvable:$true] %s51
      %57 = dma.hbm_to_vmem [thread:$0]  %s3, 256, %s52, [#allocation9], 64, 64, 4
    $region17: #{tpu_custom_call.1} parent=1 // pred_fallthru
      _
    // Predicated region
    $region18: #{tpu_custom_call.1} parent=1 // pred_check
      _
    $region19: #{tpu_custom_call.1} parent=1 // pred_check_branch
      %59 = sbr.rel (0) target = $region21
    $region20: #{tpu_custom_call.1} parent=1 // pred_region
      %s61 = ssub.s32 16, 16
      %62 = vsyncadd [#allocation9], %s61
      %s64 = sshll.u32 [#allocation10], 4
      %s65 = int_to_ptr.vmem [resolvable:$true] %s64
      %67 = dma.hbm_to_vmem [thread:$0]  %s4, 16, %s65, [#allocation9]
    $region21: #{tpu_custom_call.1} parent=1 // pred_fallthru
      _
    // Predicated region
    $region22: #{tpu_custom_call.1} parent=1 // pred_check
      _
    $region23: #{tpu_custom_call.1} parent=1 // pred_check_branch
      %69 = sbr.rel (0) target = $region25
    $region24: #{tpu_custom_call.1} parent=1 // pred_region
      %70 = dma.done [#allocation3], 128
    $region25: #{tpu_custom_call.1} parent=1 // pred_fallthru
      _
    // Predicated region
    $region26: #{tpu_custom_call.1} parent=1 // pred_check
      _
    $region27: #{tpu_custom_call.1} parent=1 // pred_check_branch
      %72 = sbr.rel (0) target = $region29
    $region28: #{tpu_custom_call.1} parent=1 // pred_region
      %73 = dma.done [#allocation6], 32
    $region29: #{tpu_custom_call.1} parent=1 // pred_fallthru
      _
    // Predicated region
    $region30: #{tpu_custom_call.1} parent=1 // pred_check
      _
    $region31: #{tpu_custom_call.1} parent=1 // pred_check_branch
      %75 = sbr.rel (0) target = $region33
    $region32: #{tpu_custom_call.1} parent=1 // pred_region
      %76 = dma.done [#allocation6], 16
    $region33: #{tpu_custom_call.1} parent=1 // pred_fallthru
      _
    // Predicated region
    $region34: #{tpu_custom_call.1} parent=1 // pred_check
      _
    $region35: #{tpu_custom_call.1} parent=1 // pred_check_branch
      %78 = sbr.rel (0) target = $region37
    $region36: #{tpu_custom_call.1} parent=1 // pred_region
      %79 = dma.done [#allocation9], 256
    $region37: #{tpu_custom_call.1} parent=1 // pred_fallthru
      _
    // Predicated region
    $region38: #{tpu_custom_call.1} parent=1 // pred_check
      _
    $region39: #{tpu_custom_call.1} parent=1 // pred_check_branch
      %81 = sbr.rel (0) target = $region41
    $region40: #{tpu_custom_call.1} parent=1 // pred_region
      %82 = dma.done [#allocation9], 16
    $region41: #{tpu_custom_call.1} parent=1 // pred_fallthru
      _
    %v84 = vld [vmem:[#allocation2] sm:$0xf]
    %v85 = vld [vmem:[#allocation2 + $0x4] sm:$0xf]
    %v86 = vld [vmem:[#allocation5] sm:$0x3]
    %v87 = vld [vmem:[#allocation7] sm:$0x1]
    %v89 = vlaneseq
    %v90 = vshrl.u32 %v89, 7
    %v91 = vsub.s32 0, %v90
    %v92 = vrot.slane %v87, %v91
    %v96 = vunpack.c.l.b16 %v84
    %v97 = vunpack.c.l.b16 %v85
    %v98 = vpack.c.b16 %v97, %v96
    %vm99 = vcmask 31744
    %v101 = vsel %vm99, %v98, 0
    %vm103 = vcmask 1041408
    %v105 = vsel %vm103, %v86, 0
    %107 = vmatprep.subr.bf16.mxu0 0
    %108 = vmatpush1.bf16.msra.mxu0 %v105
    %109 = vmatprep.subr.bf16.mxu0 0
    %110 = vmatpush1.bf16.msra.mxu0 0
    %111 = vmatprep.subr.bf16.mxu0 0
    %112 = vmatpush1.bf16.msra.mxu0 0
    %113 = vmatprep.subr.bf16.mxu0 0
    %114 = vmatpush1.bf16.msra.mxu0 0
    %115 = vmatprep.subr.bf16.mxu0 0
    %116 = vmatpush1.bf16.msra.mxu0 0
    %117 = vmatprep.subr.bf16.mxu0 0
    %118 = vmatpush1.bf16.msra.mxu0 0
    %119 = vmatprep.subr.bf16.mxu0 0
    %120 = vmatpush1.bf16.msra.mxu0 0
    %121 = vmatprep.subr.bf16.mxu0 0
    %122 = vmatpush1.bf16.msra.mxu0 0
    %123 = vmatprep.subr.bf16.mxu0 0
    %124 = vmatpush1.bf16.msra.mxu0 0
    %125 = vmatprep.subr.bf16.mxu0 0
    %126 = vmatpush1.bf16.msra.mxu0 0
    %127 = vmatprep.subr.bf16.mxu0 0
    %128 = vmatpush1.bf16.msra.mxu0 0
    %129 = vmatprep.subr.bf16.mxu0 0
    %130 = vmatpush1.bf16.msra.mxu0 0
    %131 = vmatprep.subr.bf16.mxu0 0
    %132 = vmatpush1.bf16.msra.mxu0 0
    %133 = vmatprep.subr.bf16.mxu0 0
    %134 = vmatpush1.bf16.msra.mxu0 0
    %135 = vmatprep.subr.bf16.mxu0 0
    %136 = vmatpush1.bf16.msra.mxu0 0
    %137 = vmatprep.subr.bf16.mxu0 0
    %138 = vmatpush1.bf16.msra.mxu0 0
    %139 = vmatprep.mubr.bf16.mxu0 0
    %140 = vmatmul.mubr.bf16.gmra.mrb[0].mxu0 %v101
    %v141 = vpop.f32.mrb[0].mxu0
    %v142 = vadd.f32 %v92, %v141
    %v143 = vpop.f32.mrb[0].mxu0
    %v144 = vpop.f32.mrb[0].mxu0
    %v145 = vadd.f32 %v92, %v144
    %v146 = vpop.f32.mrb[0].mxu0
    %147 = vdwg.mxu0
    %v148 = vmax.f32 %v142, 0.0
    %v149 = vmax.f32 %v145, 0.0
    %v150 = vpack.c.bf16 %v149, %v148
    %v151 = vld [vmem:[#allocation8] sm:$0xf]
    %v152 = vld [vmem:[#allocation8 + $0x4] sm:$0xf]
    %v153 = vld [vmem:[#allocation8 + $0x8] sm:$0xf]
    %v154 = vld [vmem:[#allocation8 + $0xc] sm:$0xf]
    %v155 = vld [vmem:[#allocation10] sm:$0x1]
    %v157 = vlaneseq
    %v158 = vshrl.u32 %v157, 7
    %v159 = vsub.s32 0, %v158
    %v160 = vrot.slane %v155, %v159
    %v166 = vunpack.c.l.b16 %v151
    %v167 = vunpack.c.l.b16 %v152
    %v168 = vunpack.c.l.b16 %v153
    %v169 = vunpack.c.l.b16 %v154
    %v170 = vpack.c.b16 %v167, %v166
    %v171 = vpack.c.b16 %v169, %v168
    %vm174 = vcmask 261120
    %v176 = vsel %vm174, %v150, 0
    %178 = vmatprep.subr.bf16.mxu0 0
    %179 = vmatpush1.bf16.msra.mxu0 %v170
    %180 = vmatprep.subr.bf16.mxu0 0
    %181 = vmatpush1.bf16.msra.mxu0 %v171
    %182 = vmatprep.subr.bf16.mxu0 0
    %183 = vmatpush1.bf16.msra.mxu0 0
    %184 = vmatprep.subr.bf16.mxu0 0
    %185 = vmatpush1.bf16.msra.mxu0 0
    %186 = vmatprep.subr.bf16.mxu0 0
    %187 = vmatpush1.bf16.msra.mxu0 0
    %188 = vmatprep.subr.bf16.mxu0 0
    %189 = vmatpush1.bf16.msra.mxu0 0
    %190 = vmatprep.subr.bf16.mxu0 0
    %191 = vmatpush1.bf16.msra.mxu0 0
    %192 = vmatprep.subr.bf16.mxu0 0
    %193 = vmatpush1.bf16.msra.mxu0 0
    %194 = vmatprep.subr.bf16.mxu0 0
    %195 = vmatpush1.bf16.msra.mxu0 0
    %196 = vmatprep.subr.bf16.mxu0 0
    %197 = vmatpush1.bf16.msra.mxu0 0
    %198 = vmatprep.subr.bf16.mxu0 0
    %199 = vmatpush1.bf16.msra.mxu0 0
    %200 = vmatprep.subr.bf16.mxu0 0
    %201 = vmatpush1.bf16.msra.mxu0 0
    %202 = vmatprep.subr.bf16.mxu0 0
    %203 = vmatpush1.bf16.msra.mxu0 0
    %204 = vmatprep.subr.bf16.mxu0 0
    %205 = vmatpush1.bf16.msra.mxu0 0
    %206 = vmatprep.subr.bf16.mxu0 0
    %207 = vmatpush1.bf16.msra.mxu0 0
    %208 = vmatprep.subr.bf16.mxu0 0
    %209 = vmatpush1.bf16.msra.mxu0 0
    %210 = vmatprep.mubr.bf16.mxu0 0
    %211 = vmatmul.mubr.bf16.gmra.mrb[0].mxu0 %v176
    %v212 = vpop.f32.mrb[0].mxu0
    %v213 = vadd.f32 %v160, %v212
    %v214 = vpop.f32.mrb[0].mxu0
    %v215 = vpop.f32.mrb[0].mxu0
    %v216 = vadd.f32 %v160, %v215
    %v217 = vpop.f32.mrb[0].mxu0
    %218 = vdwg.mxu0
    %v219 = vpack.c.bf16 %v216, %v213
    %v221 = vunpack.c.l.b16 %v219
    %v222 = vunpack.c.h.b16 %v219
    %v223 = vpack.c.b16 %v221, %v221
    %v224 = vpack.c.b16 %v222, %v222
    %vm227 = vcmask 257024
    %228 = vst.msk [vmem:[#allocation11] sm:$0xf] %vm227, %v223
    %229 = vst.msk [vmem:[#allocation11 + $0x4] sm:$0xf] %vm227, %v224
    // Predicated region
    $region42: #{tpu_custom_call.1} parent=1 // pred_check
      _
    $region43: #{tpu_custom_call.1} parent=1 // pred_check_branch
      %231 = sbr.rel (0) target = $region45
    $region44: #{tpu_custom_call.1} parent=1 // pred_region
      %s233 = ssub.s32 128, 128
      %234 = vsyncadd [#allocation4], %s233
      %s235 = sshll.u32 [#allocation11], 4
      %s236 = int_to_ptr.vmem [resolvable:$true] %s235
      %241 = dma.vmem_to_hbm [thread:$0]  %s236, 128, %s5, [#allocation4], 64, 64, 4
    $region45: #{tpu_custom_call.1} parent=1 // pred_fallthru
      _
    // Predicated region
    $region46: #{tpu_custom_call.1} parent=1 // pred_check
      _
    $region47: #{tpu_custom_call.1} parent=1 // pred_check_branch
      %243 = sbr.rel (0) target = $region49
    $region48: #{tpu_custom_call.1} parent=1 // pred_region
      %244 = dma.done [#allocation4], 128
    $region49: #{tpu_custom_call.1} parent=1 // pred_fallthru
      _
    %245 = vsyncpa [#allocation3], 1
    %246 = vsyncpa [#allocation6], 1
    %247 = vsyncpa [#allocation9], 1
    %248 = vsyncpa [#allocation4], 1

</llo_original>
